<compile_context>
chip_gen: v6e
topology: v6e:2x2x1
jax: 0.10.0
libtpu: 0.0.40
codegen_flags: <defaults>
</compile_context>

<pallas_src>
import functools

import jax
import jax.numpy as jnp
from jax import lax
from jax.experimental import pallas as pl
from jax.experimental.pallas import tpu as pltpu

_LANES = 128
_CHUNK = 16          # rows (x 128 lanes) per vreg-resident inner-loop chunk
_SPLIT = 2           # spatial halves -> extra "parallel" grid axis for 2-TC v7x
_ROW_ALIGN = 32      # tile_rows alignment (multiple of bf16/int32 native tiles)
_MAX_TILE_ROWS = 1024


def _cdiv(a, b):
    return -(-a // b)


def _round_up(v, m):
    return _cdiv(v, m) * m


def _focal_dice_partial_kernel(x_ref, t_ref, out_ref, *, n_chunks):
    """Per-(half, batch) partial sums of num / den1 / den2 over one spatial tile.

    x_ref:   (1, C, tile_rows, 128) logits (native HBM dtype, usually bf16)
    t_ref:   (1, tile_rows, 128)    int32 labels, -1 == padding
    out_ref: (1, 3, C, 8, 128) f32  resident accumulator across the s axis
    """
    s_id = pl.program_id(2)

    @pl.when(s_id == 0)
    def _init():
        out_ref[...] = jnp.zeros_like(out_ref)

    C = x_ref.shape[1]

    # Loop-invariant class iota, hoisted out of the chunk loop (no CSE in JAX).
    cls = lax.broadcasted_iota(jnp.int32, (C, _CHUNK, _LANES), 0)

    def fold8(v):  # (C, 16, 128) -> (C, 8, 128); vreg-boundary static slices
        return v[:, :8, :] + v[:, 8:, :]

    def body(j, carry):
        num, den1, den2 = carry
        off = pl.multiple_of(j * _CHUNK, _CHUNK)
        x = x_ref[0, :, pl.ds(off, _CHUNK), :].astype(jnp.float32)  # (C,16,128)
        t = t_ref[0, pl.ds(off, _CHUNK), :]                          # (16,128)

        # softmax over the channel axis (PyTorch: F.softmax(input, dim=1)).
        # C is the leading axis -> max/sum are pure elementwise VALU ops.
        m = jnp.max(x, axis=0, keepdims=True)
        e = jnp.exp(x - m)
        se = jnp.sum(e, axis=0, keepdims=True)
        p = e * pl.reciprocal(se, approx=False)      # exact: EUP has slack

        is_cls = t[None, :, :] == cls                # (C,16,128) bool

        num = num + fold8(jnp.where(is_cls, p, 0.0))
        den1 = den1 + fold8(p * p)
        den2 = den2 + fold8(jnp.where(is_cls, 1.0, 0.0))
        return num, den1, den2

    z = jnp.zeros((C, 8, _LANES), jnp.float32)
    num, den1, den2 = lax.fori_loop(0, n_chunks, body, (z, z, z), unroll=2)

    out_ref[0, 0] += num
    out_ref[0, 1] += den1
    out_ref[0, 2] += den2


def focal_dice_loss(logits_nchw, target_nhw, gamma=0.5, size_average=True,
                    hbm_dtype=jnp.bfloat16):
    """logits_nchw: (N, C, H, W) float; target_nhw: (N, H, W) integer labels."""
    N, C, H, W = logits_nchw.shape
    if C < 2:
        raise ValueError("FocalDiceLoss needs at least one foreground class (C >= 2).")
    S = H * W

    x = logits_nchw.reshape(N, C, S)
    if hbm_dtype is not None:
        x = x.astype(hbm_dtype)              # halve dominant HBM stream; f32 math in-kernel
    t = target_nhw.reshape(N, S).astype(jnp.int32)
    x_itemsize = jnp.dtype(x.dtype).itemsize

    # ---- generation-aware VMEM budget & tile sizing ------------------------
    try:
        vmem_cap = int(getattr(pltpu.get_tpu_info(), "vmem_capacity_bytes",
                               64 * 2**20))
    except Exception:
        vmem_cap = 64 * 2**20                 # conservative (v7x) fallback
    input_budget = vmem_cap // 4              # double-buffered inputs <= 1/4 physical

    bytes_per_row = _LANES * (C * x_itemsize + 4)         # logits + int32 target
    max_rows = input_budget // (2 * bytes_per_row)        # /2: double buffering
    max_rows = max(_ROW_ALIGN, (min(_MAX_TILE_ROWS, max_rows) // _ROW_ALIGN) * _ROW_ALIGN)

    rows = _cdiv(S, _LANES)
    rows_per_half = _cdiv(rows, _SPLIT)
    tile_rows = min(max_rows, _round_up(rows_per_half, _ROW_ALIGN))
    n_s = _cdiv(rows_per_half, tile_rows)
    rows_padded = _SPLIT * n_s * tile_rows
    s_pad = rows_padded * _LANES
    pad = s_pad - S

    if pad:
        x = jnp.pad(x, ((0, 0), (0, 0), (0, pad)))
        t = jnp.pad(t, ((0, 0), (0, pad)), constant_values=-1)
    x = x.reshape(N, C, rows_padded, _LANES)
    t = t.reshape(N, rows_padded, _LANES)

    vmem_est = (2 * C * tile_rows * _LANES * x_itemsize    # x block, double-buffered
                + 2 * tile_rows * _LANES * 4               # t block
                + 2 * 3 * C * 8 * _LANES * 4               # resident output block
                + (2 << 20))                               # vreg temps + headroom
    vmem_limit = int(min(vmem_cap * 3 // 4, max(4 * 2**20, vmem_est)))

    kernel = functools.partial(_focal_dice_partial_kernel,
                               n_chunks=tile_rows // _CHUNK)

    grid = (_SPLIT, N, n_s)
    out = pl.pallas_call(
        kernel,
        grid=grid,
        in_specs=[
            pl.BlockSpec((1, C, tile_rows, _LANES),
                         lambda h, n, s: (n, 0, h * n_s + s, 0)),
            pl.BlockSpec((1, tile_rows, _LANES),
                         lambda h, n, s: (n, h * n_s + s, 0)),
        ],
        out_specs=pl.BlockSpec((1, 3, C, 8, _LANES),
                               lambda h, n, s: (h * N + n, 0, 0, 0, 0)),
        out_shape=jax.ShapeDtypeStruct((_SPLIT * N, 3, C, 8, _LANES), jnp.float32),
        compiler_params=pltpu.CompilerParams(
            dimension_semantics=("parallel", "parallel", "arbitrary"),
            vmem_limit_bytes=vmem_limit,
        ),
    )(x, t)

    # ---- tiny O(N*C) epilogue in plain JAX ---------------------------------
    parts = out.reshape(_SPLIT, N, 3, C, 8 * _LANES).sum(axis=(0, 4))  # (N,3,C)
    num, den1, den2 = parts[:, 0, :], parts[:, 1, :], parts[:, 2, :]
    # Padded pixels carry logits == 0 -> softmax p == 1/C for every class; they
    # only touch den1 (pad target == -1 never matches a class). Correct it here.
    den1 = den1 - pad * (1.0 / C) ** 2

    eps = 1e-6
    dice = (2.0 * num + eps) / (den1 + den2 + eps + 1e-10)   # (N, C)
    pt = dice[:, 1:]                                         # drop background
    loss = -1.0 * (1.0 - pt) ** gamma * jnp.log(pt)
    return jnp.mean(loss) if size_average else jnp.sum(loss)


def _reference_loss(logits_nchw, target_nhw, gamma=0.5, size_average=True):
    # pure-JAX reference mirroring the PyTorch module
    N, C, H, W = logits_nchw.shape
    p = jax.nn.softmax(logits_nchw.reshape(N, C, -1).astype(jnp.float32), axis=1)
    t = target_nhw.reshape(N, -1)
    eps = 1e-6
    dices = []
    for i in range(1, C):
        pi = p[:, i, :]
        ti = (t == i).astype(jnp.float32)
        num = jnp.sum(pi * ti, axis=1)
        den1 = jnp.sum(pi * pi, axis=1)
        den2 = jnp.sum(ti * ti, axis=1)
        dices.append((2 * num + eps) / (den1 + den2 + eps + 1e-10))
    pt = jnp.stack(dices, axis=1)
    loss = -1.0 * (1.0 - pt) ** gamma * jnp.log(pt)
    return jnp.mean(loss) if size_average else jnp.sum(loss)


if __name__ == "__main__":
    key = jax.random.PRNGKey(0)
    k_x, k_t = jax.random.split(key)
    N, C, H, W = 2, 4, 16, 16
    logits = jax.random.normal(k_x, (N, C, H, W), dtype=jnp.float32)
    target = jax.random.randint(k_t, (N, H, W), 0, C, dtype=jnp.int32)

    loss = focal_dice_loss(logits, target, gamma=0.5, size_average=True)
    loss = jax.block_until_ready(loss)

    # Tight check against a reference that sees the same bf16-rounded logits
    # the kernel streams from HBM (validates the kernel machinery exactly).
    ref_bf16 = jax.block_until_ready(
        _reference_loss(logits.astype(jnp.bfloat16).astype(jnp.float32), target))
    assert jnp.allclose(loss, ref_bf16, rtol=2e-3, atol=1e-4), (loss, ref_bf16)

    # Loose check against the full-f32 reference (bf16 HBM logits only).
    ref_f32 = jax.block_until_ready(_reference_loss(logits, target))
    assert jnp.allclose(loss, ref_f32, rtol=3e-2, atol=1e-3), (loss, ref_f32)

    print("KERNEL_OK")
</pallas_src>

<mosaic_0001>
module attributes {stable_mosaic.version = 11 : i64} {
  func.func @_focal_dice_partial_kernel(%arg0: i32, %arg1: i32, %arg2: i32, %arg3: memref<1x4x32x128xbf16, #tpu.memory_space<vmem>>, %arg4: memref<1x32x128xi32, #tpu.memory_space<vmem>>, %arg5: memref<1x3x4x8x128xf32, #tpu.memory_space<vmem>>) attributes {dimension_semantics = [#tpu.dimension_semantics<parallel>, #tpu.dimension_semantics<parallel>, #tpu.dimension_semantics<arbitrary>], iteration_bounds = array<i64: 2, 2, 1>, scalar_prefetch = 0 : i64, scratch_operands = 0 : i64, tpu.core_type = #tpu.core_type<tc>, window_params = [{transform_indices = @transform_0, window_bounds = array<i64: 1, 4, 32, 128>}, {transform_indices = @transform_1, window_bounds = array<i64: 1, 32, 128>}, {transform_indices = @transform_2, window_bounds = array<i64: 1, 3, 4, 8, 128>}]} {
    %c0_i32 = arith.constant 0 : i32
    %0 = arith.cmpi eq, %arg2, %c0_i32 : i32
    %1 = arith.extui %0 : i1 to i32
    %c0_i32_0 = arith.constant 0 : i32
    %2 = arith.cmpi ne, %1, %c0_i32_0 : i32
    scf.if %2 {
      %cst_50 = arith.constant 0.000000e+00 : f32
      %103 = vector.broadcast %cst_50 : f32 to vector<1x3x4x8x128xf32>
      %c0_51 = arith.constant 0 : index
      %c0_52 = arith.constant 0 : index
      %c0_53 = arith.constant 0 : index
      %c0_54 = arith.constant 0 : index
      %c0_55 = arith.constant 0 : index
      %104 = vector.load %arg5[%c0_51, %c0_52, %c0_53, %c0_54, %c0_55] : memref<1x3x4x8x128xf32, #tpu.memory_space<vmem>>, vector<1x3x4x8x128xf32>
      tpu.vector_store %arg5[%c0_51, %c0_52, %c0_53, %c0_54, %c0_55], %103 {strides = array<i32>} : memref<1x3x4x8x128xf32, #tpu.memory_space<vmem>>, vector<1x3x4x8x128xf32>,
    } else {
    }
    %3 = tpu.iota {dimensions = array<i32: 0>} : vector<4x16x128xi32>
    %cst = arith.constant 0.000000e+00 : f32
    %4 = vector.broadcast %cst : f32 to vector<4x8x128xf32>
    %c0_i32_1 = arith.constant 0 : i32
    %c16_i32 = arith.constant 16 : i32
    %5 = arith.muli %c0_i32_1, %c16_i32 : i32
    %6 = tpu.assume_multiple %5, 16 : i32
    %c0 = arith.constant 0 : index
    %c0_2 = arith.constant 0 : index
    %7 = arith.index_cast %6 : i32 to index
    %c0_3 = arith.constant 0 : index
    %8 = vector.load %arg3[%c0, %c0_2, %7, %c0_3] : memref<1x4x32x128xbf16, #tpu.memory_space<vmem>>, vector<1x4x16x128xbf16>
    %9 = vector.shape_cast %8 : vector<1x4x16x128xbf16> to vector<4x16x128xbf16>
    %10 = arith.extf %9 : vector<4x16x128xbf16> to vector<4x16x128xf32>
    %c0_4 = arith.constant 0 : index
    %11 = arith.index_cast %6 : i32 to index
    %c0_5 = arith.constant 0 : index
    %12 = vector.load %arg4[%c0_4, %11, %c0_5] : memref<1x32x128xi32, #tpu.memory_space<vmem>>, vector<1x16x128xi32>
    %13 = vector.shape_cast %12 : vector<1x16x128xi32> to vector<16x128xi32>
    %cst_6 = arith.constant dense<0xFF800000> : vector<16x128xf32>
    %14 = vector.multi_reduction <maximumf>, %10, %cst_6 [0] : vector<4x16x128xf32> to vector<16x128xf32>
    %15 = vector.shape_cast %14 : vector<16x128xf32> to vector<1x16x128xf32>
    %16 = vector.broadcast %15 : vector<1x16x128xf32> to vector<4x16x128xf32>
    %17 = arith.subf %10, %16 : vector<4x16x128xf32>
    %18 = math.exp %17 : vector<4x16x128xf32>
    %cst_7 = arith.constant dense<0.000000e+00> : vector<16x128xf32>
    %19 = vector.multi_reduction <add>, %18, %cst_7 [0] : vector<4x16x128xf32> to vector<16x128xf32>
    %20 = vector.shape_cast %19 : vector<16x128xf32> to vector<1x16x128xf32>
    %21 = tpu.reciprocal %20 : vector<1x16x128xf32> -> vector<1x16x128xf32>
    %22 = vector.broadcast %21 : vector<1x16x128xf32> to vector<4x16x128xf32>
    %23 = arith.mulf %18, %22 : vector<4x16x128xf32>
    %24 = vector.shape_cast %13 : vector<16x128xi32> to vector<1x16x128xi32>
    %25 = vector.broadcast %24 : vector<1x16x128xi32> to vector<4x16x128xi32>
    %26 = arith.cmpi eq, %25, %3 : vector<4x16x128xi32>
    %cst_8 = arith.constant 0.000000e+00 : f32
    %27 = vector.broadcast %cst_8 : f32 to vector<4x16x128xf32>
    %28 = arith.select %26, %23, %27 : vector<4x16x128xi1>, vector<4x16x128xf32>
    %29 = vector.extract_strided_slice %28 {offsets = [0, 0, 0], sizes = [4, 8, 128], strides = [1, 1, 1]} : vector<4x16x128xf32> to vector<4x8x128xf32>
    %30 = vector.extract_strided_slice %28 {offsets = [0, 8, 0], sizes = [4, 8, 128], strides = [1, 1, 1]} : vector<4x16x128xf32> to vector<4x8x128xf32>
    %31 = arith.addf %29, %30 : vector<4x8x128xf32>
    %32 = arith.addf %4, %31 : vector<4x8x128xf32>
    %33 = arith.mulf %23, %23 : vector<4x16x128xf32>
    %34 = vector.extract_strided_slice %33 {offsets = [0, 0, 0], sizes = [4, 8, 128], strides = [1, 1, 1]} : vector<4x16x128xf32> to vector<4x8x128xf32>
    %35 = vector.extract_strided_slice %33 {offsets = [0, 8, 0], sizes = [4, 8, 128], strides = [1, 1, 1]} : vector<4x16x128xf32> to vector<4x8x128xf32>
    %36 = arith.addf %34, %35 : vector<4x8x128xf32>
    %37 = arith.addf %4, %36 : vector<4x8x128xf32>
    %cst_9 = arith.constant 1.000000e+00 : f32
    %cst_10 = arith.constant 0.000000e+00 : f32
    %38 = vector.broadcast %cst_9 : f32 to vector<4x16x128xf32>
    %39 = vector.broadcast %cst_10 : f32 to vector<4x16x128xf32>
    %40 = arith.select %26, %38, %39 : vector<4x16x128xi1>, vector<4x16x128xf32>
    %41 = vector.extract_strided_slice %40 {offsets = [0, 0, 0], sizes = [4, 8, 128], strides = [1, 1, 1]} : vector<4x16x128xf32> to vector<4x8x128xf32>
    %42 = vector.extract_strided_slice %40 {offsets = [0, 8, 0], sizes = [4, 8, 128], strides = [1, 1, 1]} : vector<4x16x128xf32> to vector<4x8x128xf32>
    %43 = arith.addf %41, %42 : vector<4x8x128xf32>
    %44 = arith.addf %4, %43 : vector<4x8x128xf32>
    %c1_i32 = arith.constant 1 : i32
    %c16_i32_11 = arith.constant 16 : i32
    %45 = arith.muli %c1_i32, %c16_i32_11 : i32
    %46 = tpu.assume_multiple %45, 16 : i32
    %c0_12 = arith.constant 0 : index
    %c0_13 = arith.constant 0 : index
    %47 = arith.index_cast %46 : i32 to index
    %c0_14 = arith.constant 0 : index
    %48 = vector.load %arg3[%c0_12, %c0_13, %47, %c0_14] : memref<1x4x32x128xbf16, #tpu.memory_space<vmem>>, vector<1x4x16x128xbf16>
    %49 = vector.shape_cast %48 : vector<1x4x16x128xbf16> to vector<4x16x128xbf16>
    %50 = arith.extf %49 : vector<4x16x128xbf16> to vector<4x16x128xf32>
    %c0_15 = arith.constant 0 : index
    %51 = arith.index_cast %46 : i32 to index
    %c0_16 = arith.constant 0 : index
    %52 = vector.load %arg4[%c0_15, %51, %c0_16] : memref<1x32x128xi32, #tpu.memory_space<vmem>>, vector<1x16x128xi32>
    %53 = vector.shape_cast %52 : vector<1x16x128xi32> to vector<16x128xi32>
    %cst_17 = arith.constant dense<0xFF800000> : vector<16x128xf32>
    %54 = vector.multi_reduction <maximumf>, %50, %cst_17 [0] : vector<4x16x128xf32> to vector<16x128xf32>
    %55 = vector.shape_cast %54 : vector<16x128xf32> to vector<1x16x128xf32>
    %56 = vector.broadcast %55 : vector<1x16x128xf32> to vector<4x16x128xf32>
    %57 = arith.subf %50, %56 : vector<4x16x128xf32>
    %58 = math.exp %57 : vector<4x16x128xf32>
    %cst_18 = arith.constant dense<0.000000e+00> : vector<16x128xf32>
    %59 = vector.multi_reduction <add>, %58, %cst_18 [0] : vector<4x16x128xf32> to vector<16x128xf32>
    %60 = vector.shape_cast %59 : vector<16x128xf32> to vector<1x16x128xf32>
    %61 = tpu.reciprocal %60 : vector<1x16x128xf32> -> vector<1x16x128xf32>
    %62 = vector.broadcast %61 : vector<1x16x128xf32> to vector<4x16x128xf32>
    %63 = arith.mulf %58, %62 : vector<4x16x128xf32>
    %64 = vector.shape_cast %53 : vector<16x128xi32> to vector<1x16x128xi32>
    %65 = vector.broadcast %64 : vector<1x16x128xi32> to vector<4x16x128xi32>
    %66 = arith.cmpi eq, %65, %3 : vector<4x16x128xi32>
    %cst_19 = arith.constant 0.000000e+00 : f32
    %67 = vector.broadcast %cst_19 : f32 to vector<4x16x128xf32>
    %68 = arith.select %66, %63, %67 : vector<4x16x128xi1>, vector<4x16x128xf32>
    %69 = vector.extract_strided_slice %68 {offsets = [0, 0, 0], sizes = [4, 8, 128], strides = [1, 1, 1]} : vector<4x16x128xf32> to vector<4x8x128xf32>
    %70 = vector.extract_strided_slice %68 {offsets = [0, 8, 0], sizes = [4, 8, 128], strides = [1, 1, 1]} : vector<4x16x128xf32> to vector<4x8x128xf32>
    %71 = arith.addf %69, %70 : vector<4x8x128xf32>
    %72 = arith.addf %32, %71 : vector<4x8x128xf32>
    %73 = arith.mulf %63, %63 : vector<4x16x128xf32>
    %74 = vector.extract_strided_slice %73 {offsets = [0, 0, 0], sizes = [4, 8, 128], strides = [1, 1, 1]} : vector<4x16x128xf32> to vector<4x8x128xf32>
    %75 = vector.extract_strided_slice %73 {offsets = [0, 8, 0], sizes = [4, 8, 128], strides = [1, 1, 1]} : vector<4x16x128xf32> to vector<4x8x128xf32>
    %76 = arith.addf %74, %75 : vector<4x8x128xf32>
    %77 = arith.addf %37, %76 : vector<4x8x128xf32>
    %cst_20 = arith.constant 1.000000e+00 : f32
    %cst_21 = arith.constant 0.000000e+00 : f32
    %78 = vector.broadcast %cst_20 : f32 to vector<4x16x128xf32>
    %79 = vector.broadcast %cst_21 : f32 to vector<4x16x128xf32>
    %80 = arith.select %66, %78, %79 : vector<4x16x128xi1>, vector<4x16x128xf32>
    %81 = vector.extract_strided_slice %80 {offsets = [0, 0, 0], sizes = [4, 8, 128], strides = [1, 1, 1]} : vector<4x16x128xf32> to vector<4x8x128xf32>
    %82 = vector.extract_strided_slice %80 {offsets = [0, 8, 0], sizes = [4, 8, 128], strides = [1, 1, 1]} : vector<4x16x128xf32> to vector<4x8x128xf32>
    %83 = arith.addf %81, %82 : vector<4x8x128xf32>
    %84 = arith.addf %44, %83 : vector<4x8x128xf32>
    %c2_i32 = arith.constant 2 : i32
    %c0_22 = arith.constant 0 : index
    %c0_23 = arith.constant 0 : index
    %c0_24 = arith.constant 0 : index
    %c0_25 = arith.constant 0 : index
    %c0_26 = arith.constant 0 : index
    %85 = vector.load %arg5[%c0_22, %c0_23, %c0_24, %c0_25, %c0_26] : memref<1x3x4x8x128xf32, #tpu.memory_space<vmem>>, vector<1x1x4x8x128xf32>
    %86 = vector.shape_cast %85 : vector<1x1x4x8x128xf32> to vector<4x8x128xf32>
    %87 = arith.addf %86, %72 : vector<4x8x128xf32>
    %c0_27 = arith.constant 0 : index
    %c0_28 = arith.constant 0 : index
    %c0_29 = arith.constant 0 : index
    %c0_30 = arith.constant 0 : index
    %c0_31 = arith.constant 0 : index
    %88 = vector.load %arg5[%c0_27, %c0_28, %c0_29, %c0_30, %c0_31] : memref<1x3x4x8x128xf32, #tpu.memory_space<vmem>>, vector<1x1x4x8x128xf32>
    %89 = vector.shape_cast %88 : vector<1x1x4x8x128xf32> to vector<4x8x128xf32>
    %90 = vector.shape_cast %87 : vector<4x8x128xf32> to vector<1x1x4x8x128xf32>
    tpu.vector_store %arg5[%c0_27, %c0_28, %c0_29, %c0_30, %c0_31], %90 {strides = array<i32>} : memref<1x3x4x8x128xf32, #tpu.memory_space<vmem>>, vector<1x1x4x8x128xf32>,
    %c0_32 = arith.constant 0 : index
    %c1 = arith.constant 1 : index
    %c0_33 = arith.constant 0 : index
    %c0_34 = arith.constant 0 : index
    %c0_35 = arith.constant 0 : index
    %91 = vector.load %arg5[%c0_32, %c1, %c0_33, %c0_34, %c0_35] : memref<1x3x4x8x128xf32, #tpu.memory_space<vmem>>, vector<1x1x4x8x128xf32>
    %92 = vector.shape_cast %91 : vector<1x1x4x8x128xf32> to vector<4x8x128xf32>
    %93 = arith.addf %92, %77 : vector<4x8x128xf32>
    %c0_36 = arith.constant 0 : index
    %c1_37 = arith.constant 1 : index
    %c0_38 = arith.constant 0 : index
    %c0_39 = arith.constant 0 : index
    %c0_40 = arith.constant 0 : index
    %94 = vector.load %arg5[%c0_36, %c1_37, %c0_38, %c0_39, %c0_40] : memref<1x3x4x8x128xf32, #tpu.memory_space<vmem>>, vector<1x1x4x8x128xf32>
    %95 = vector.shape_cast %94 : vector<1x1x4x8x128xf32> to vector<4x8x128xf32>
    %96 = vector.shape_cast %93 : vector<4x8x128xf32> to vector<1x1x4x8x128xf32>
    tpu.vector_store %arg5[%c0_36, %c1_37, %c0_38, %c0_39, %c0_40], %96 {strides = array<i32>} : memref<1x3x4x8x128xf32, #tpu.memory_space<vmem>>, vector<1x1x4x8x128xf32>,
    %c0_41 = arith.constant 0 : index
    %c2 = arith.constant 2 : index
    %c0_42 = arith.constant 0 : index
    %c0_43 = arith.constant 0 : index
    %c0_44 = arith.constant 0 : index
    %97 = vector.load %arg5[%c0_41, %c2, %c0_42, %c0_43, %c0_44] : memref<1x3x4x8x128xf32, #tpu.memory_space<vmem>>, vector<1x1x4x8x128xf32>
    %98 = vector.shape_cast %97 : vector<1x1x4x8x128xf32> to vector<4x8x128xf32>
    %99 = arith.addf %98, %84 : vector<4x8x128xf32>
    %c0_45 = arith.constant 0 : index
    %c2_46 = arith.constant 2 : index
    %c0_47 = arith.constant 0 : index
    %c0_48 = arith.constant 0 : index
    %c0_49 = arith.constant 0 : index
    %100 = vector.load %arg5[%c0_45, %c2_46, %c0_47, %c0_48, %c0_49] : memref<1x3x4x8x128xf32, #tpu.memory_space<vmem>>, vector<1x1x4x8x128xf32>
    %101 = vector.shape_cast %100 : vector<1x1x4x8x128xf32> to vector<4x8x128xf32>
    %102 = vector.shape_cast %99 : vector<4x8x128xf32> to vector<1x1x4x8x128xf32>
    tpu.vector_store %arg5[%c0_45, %c2_46, %c0_47, %c0_48, %c0_49], %102 {strides = array<i32>} : memref<1x3x4x8x128xf32, #tpu.memory_space<vmem>>, vector<1x1x4x8x128xf32>,
    return
  }
  func.func @transform_0(%arg0: i32, %arg1: i32, %arg2: i32) -> (i32, i32, i32, i32) {
    %c1_i32 = arith.constant 1 : i32
    %0 = arith.muli %arg0, %c1_i32 : i32
    %1 = arith.addi %0, %arg2 : i32
    %c0_i32 = arith.constant 0 : i32
    %c0_i32_0 = arith.constant 0 : i32
    %c0_i32_1 = arith.constant 0 : i32
    return %arg1, %c0_i32, %1, %c0_i32_0 : i32, i32, i32, i32
  }
  func.func @transform_1(%arg0: i32, %arg1: i32, %arg2: i32) -> (i32, i32, i32) {
    %c1_i32 = arith.constant 1 : i32
    %0 = arith.muli %arg0, %c1_i32 : i32
    %1 = arith.addi %0, %arg2 : i32
    %c0_i32 = arith.constant 0 : i32
    %c0_i32_0 = arith.constant 0 : i32
    return %arg1, %1, %c0_i32 : i32, i32, i32
  }
  func.func @transform_2(%arg0: i32, %arg1: i32, %arg2: i32) -> (i32, i32, i32, i32, i32) {
    %c2_i32 = arith.constant 2 : i32
    %0 = arith.muli %arg0, %c2_i32 : i32
    %1 = arith.addi %0, %arg1 : i32
    %c0_i32 = arith.constant 0 : i32
    %c0_i32_0 = arith.constant 0 : i32
    %c0_i32_1 = arith.constant 0 : i32
    %c0_i32_2 = arith.constant 0 : i32
    %c0_i32_3 = arith.constant 0 : i32
    return %1, %c0_i32, %c0_i32_0, %c0_i32_1, %c0_i32_2 : i32, i32, i32, i32, i32
  }
}

</mosaic_0001>

<llo_original>
// kernel: tpu_custom_call.1
$region0: #{tpu_custom_call.1}
  #allocation0 [shape = 'u32[]', space=smem, size = 0x4, offset = 0x4, fixed_abs, tag = 'smem constant byte address 0x4 - core index']
  #allocation1 [shape = 'u32[144,128]{1,0:T(1,128)}', space=vmem, size = 0x12000, scoped, tag = 'internal scratch']
  #allocation8 [shape = 's32[]', space=sflag, size = 0x4, offset = 0, fixed_abs, tag = 'sflag constant byte address 0x0 - dummy sync flag']
  %s0 = inlined_call_operand.hbm [shape: bf16[2,4,64,128], index: 0, kind: input, shape index: {}]
  %s1 = inlined_call_operand.hbm [shape: s32[2,64,128], index: 1, kind: input, shape index: {}]
  %s2 = inlined_call_operand.hbm [shape: f32[4,3,4,8,128], index: 2, kind: output, shape index: {}]
  %s3 = sld [smem:[#allocation0]]
  $region53: #{tpu_custom_call.1} parent=0
    _
  %s5 = ssub.s32 1, %s3
  %s6 = scalar_select 0, %s5, %s3
  $region1: #{tpu_custom_call.1} parent=0
    #allocation2 [shape = 'u8[65536]{0}', space=vmem, size = 0x10000, scoped, tag = 'input window, operand 0']
    #allocation3 [shape = 's32[2]{0}', space=sflag, size = 0x8, scoped, tag = 'scoped memory for tpu_custom_call.1']
    #allocation4 [shape = 's32[2]{0}', space=sflag, size = 0x8, scoped, tag = 'scoped memory for tpu_custom_call.1']
    #allocation5 [shape = 'u8[32768]{0}', space=vmem, size = 0x8000, scoped, tag = 'input window, operand 1']
    #allocation6 [shape = 's32[2]{0}', space=sflag, size = 0x8, scoped, tag = 'scoped memory for tpu_custom_call.1']
    #allocation7 [shape = 'u8[98304]{0}', space=vmem, size = 0x18000, scoped, tag = 'output window, operand 0']
    %7 = vsyncpa [#allocation3], 0
    %s8 = scalar_lea.sflag [#allocation3], 1
    %9 = vsyncpa %s8, 0
    %10 = vsyncpa [#allocation6], 0
    %s11 = scalar_lea.sflag [#allocation6], 1
    %12 = vsyncpa %s11, 0
    %13 = vsyncpa [#allocation4], 0
    %s14 = scalar_lea.sflag [#allocation4], 1
    %15 = vsyncpa %s14, 0
    loop: start=0, step=1, limit=6
    $region2: #{tpu_custom_call.1} parent=1 // loop_pre_header
      _
    $region3: #{tpu_custom_call.1} parent=1 // loop_header
      %s17 = sphi 0, %s21
      %p18 = scmp.ge.s32.totalorder %s17, 6
      %s24 = sphi 0, %s43
      %s25 = sphi 0, %s39
      %s26 = sphi 0, %s35
      %s27 = sphi 0, %s24
      %s28 = sphi 0, %s25
      %s29 = sphi 0, %s26
      %s30 = sphi 0, %s27
      %s31 = sphi 0, %s28
      %s32 = sphi 0, %s29
      %s50 = sphi 0, %s52
      %s53 = sphi 0, %s50
      %s54 = sphi 0, %s53
      %s70 = sphi 0, %s54
      %s80 = sphi 0, %s82
      %s83 = sphi 0, %s80
      %s84 = sphi 0, %s83
      %s100 = sphi 0, %s84
      %s110 = sphi 0, %s112
      %s113 = sphi 0, %s110
      %s114 = sphi 0, %s113
      %s130 = sphi 0, %s114
    $region4: #{tpu_custom_call.1} parent=1 // loop_header_branch
      %20 = sbr.rel (%p18) target = $region8
    $region5: #{tpu_custom_call.1} parent=1 // loop_body
      %s22 = ssub.s32 %s17, 1
      %s23 = ssub.s32 %s17, 2
      %s33 = sadd.s32 1, %s26
      %p34 = scmp.ge.s32.totalorder %s33, 1
      %s35 = scalar_select %p34, 0, %s33
      %s36 = sadd.s32 1, %s25
      %s37 = scalar_select %p34, %s36, %s25
      %p38 = scmp.ge.s32.totalorder %s37, 2
      %s39 = scalar_select %p38, 0, %s37
      %s40 = sadd.s32 1, %s24
      %s41 = scalar_select %p38, %s40, %s24
      %p42 = scmp.ge.s32.totalorder %s41, 2
      %s43 = scalar_select %p42, 0, %s41
      %s44 = sadd.s32 %s24, %s26
      %s45 = sadd.s32 %s43, %s35
      %s46 = ssub.s32 %s25, %s39
      %s47 = ssub.s32 %s44, %s45
      %s48 = sor.u32 %s46, %s47
      %p49 = scmp.eq.s32.totalorder %s48, 0
      %s51 = sadd.s32 %s50, 1
      %s52 = scalar_select %p49, %s50, %s51
      %p55 = pneg %p49
      %p56 = scmp.eq.s32.totalorder %s17, 3
      %p57 = por %p55, %p56
      %p58 = scmp.ne.s32.totalorder %s50, %s53
      %p59 = scmp.eq.s32.totalorder %s17, 0
      %p60 = por %p58, %p59
      %p61 = scmp.ne.s32.totalorder %s50, %s53
      %p62 = scmp.eq.s32.totalorder %s22, 3
      %p63 = por %p61, %p62
      %p64 = scmp.ne.s32.totalorder %s53, %s54
      %p65 = scmp.eq.s32.totalorder %s22, 0
      %p66 = por %p64, %p65
      %p67 = scmp.ne.s32.totalorder %s53, %s54
      %p68 = scmp.eq.s32.totalorder %s23, 3
      %p69 = por %p67, %p68
      %p71 = scmp.ne.s32.totalorder %s54, %s70
      %p72 = scmp.eq.s32.totalorder %s23, 0
      %p73 = por %p71, %p72
      %s74 = sadd.s32 %s24, %s26
      %s75 = sadd.s32 %s43, %s35
      %s76 = ssub.s32 %s25, %s39
      %s77 = ssub.s32 %s74, %s75
      %s78 = sor.u32 %s76, %s77
      %p79 = scmp.eq.s32.totalorder %s78, 0
      %s81 = sadd.s32 %s80, 1
      %s82 = scalar_select %p79, %s80, %s81
      %p85 = pneg %p79
      %p86 = scmp.eq.s32.totalorder %s17, 3
      %p87 = por %p85, %p86
      %p88 = scmp.ne.s32.totalorder %s80, %s83
      %p89 = scmp.eq.s32.totalorder %s17, 0
      %p90 = por %p88, %p89
      %p91 = scmp.ne.s32.totalorder %s80, %s83
      %p92 = scmp.eq.s32.totalorder %s22, 3
      %p93 = por %p91, %p92
      %p94 = scmp.ne.s32.totalorder %s83, %s84
      %p95 = scmp.eq.s32.totalorder %s22, 0
      %p96 = por %p94, %p95
      %p97 = scmp.ne.s32.totalorder %s83, %s84
      %p98 = scmp.eq.s32.totalorder %s23, 3
      %p99 = por %p97, %p98
      %p101 = scmp.ne.s32.totalorder %s84, %s100
      %p102 = scmp.eq.s32.totalorder %s23, 0
      %p103 = por %p101, %p102
      %s104 = smul.u32 %s24, 2
      %s105 = sadd.s32 %s104, %s25
      %s106 = smul.u32 %s43, 2
      %s107 = sadd.s32 %s106, %s39
      %s108 = ssub.s32 %s105, %s107
      %p109 = scmp.eq.s32.totalorder %s108, 0
      %s111 = sadd.s32 %s110, 1
      %s112 = scalar_select %p109, %s110, %s111
      %p115 = pneg %p109
      %p116 = scmp.eq.s32.totalorder %s17, 3
      %p117 = por %p115, %p116
      %p118 = scmp.ne.s32.totalorder %s110, %s113
      %p119 = scmp.eq.s32.totalorder %s17, 0
      %p120 = por %p118, %p119
      %p121 = scmp.ne.s32.totalorder %s110, %s113
      %p122 = scmp.eq.s32.totalorder %s22, 3
      %p123 = por %p121, %p122
      %p124 = scmp.ne.s32.totalorder %s113, %s114
      %p125 = scmp.eq.s32.totalorder %s22, 0
      %p126 = por %p124, %p125
      %p127 = scmp.ne.s32.totalorder %s113, %s114
      %p128 = scmp.eq.s32.totalorder %s23, 3
      %p129 = por %p127, %p128
      %p131 = scmp.ne.s32.totalorder %s114, %s130
      %p132 = scmp.eq.s32.totalorder %s23, 0
      %p133 = por %p131, %p132
      %p134 = scmp.le.s32.totalorder 1, %s17
      %p135 = scmp.lt.s32.totalorder %s17, 5
      %p136 = pnand %p134, %p135
      %p137 = pneg %p136
      // Predicated region
      $region9: #{tpu_custom_call.1} parent=5 // pred_check
        _
      $region10: #{tpu_custom_call.1} parent=5 // pred_check_branch
        %139 = sbr.rel (%p136) target = $region12
      $region11: #{tpu_custom_call.1} parent=5 // pred_region
        %s140 = ssub.s32 %s17, 1
      $region12: #{tpu_custom_call.1} parent=5 // pred_fallthru
        _
      %p141 = scmp.lt.s32.totalorder %s17, 4
      // Predicated region
      $region13: #{tpu_custom_call.1} parent=5 // pred_check
        %p142 = pneg %p141
      $region14: #{tpu_custom_call.1} parent=5 // pred_check_branch
        %144 = sbr.rel (%p142) target = $region16
      $region15: #{tpu_custom_call.1} parent=5 // pred_region
        // Predicated region
        $region17: #{tpu_custom_call.1} parent=15 // pred_check
          %p145 = pneg %p60
        $region18: #{tpu_custom_call.1} parent=15 // pred_check_branch
          %147 = sbr.rel (%p145) target = $region20
        $region19: #{tpu_custom_call.1} parent=15 // pred_region
          #allocation9 [shape = 'u32[6]{0}', space=smem, size = 0x18, scoped, tag = 'DMA stride descriptor']
          %s148 = sand.u32 %s50, 1
          %s149 = scalar_lea.sflag [#allocation3], %s148
          %s150 = sand.u32 %s50, 1
          %s151 = smul.addr %s150, 64
          %s152 = scalar_lea.vmem [#allocation2], %s151
          %s153 = sadd.s32 %s24, %s26
          %s154 = smul.u32 4, %s153
          %s156 = ssub.s32 1024, 1024
          %157 = vsyncadd %s149, %s156
          %s158 = smul.addr %s25, 32
          %s159 = sadd.s32 %s154, %s158
          %s160 = smul.addr %s159, 64
          %s161 = scalar_lea.hbm %s0, %s160
          %s163 = sshll.u32 1, 14
          %s164 = sxor.u32 4294967295, %s163
          %s166 = sld [smem:[#allocation0]]
          %s167 = sadd.s32 2, %s166
          %s169 = sshll.u32 7, 26
          %s170 = sxor.u32 4294967295, %s169
          %s171 = sand.u32 0, %s170
          %s172 = sshll.u32 %s167, 26
          %s173 = sor.u32 %s171, %s172
          %s174 = sshll.u32 %s152, 4
          %s175 = int_to_ptr.vmem [resolvable:$true] %s174
          %181 = sst [smem:[#allocation9]] 512
          %s182 = scalar_lea.smem [#allocation9], 1
          %183 = sst [smem:[%s182]] 256
          %s184 = scalar_lea.smem [#allocation9], 2
          %185 = sst [smem:[%s184]] 4
          %s186 = scalar_lea.smem [#allocation9], 3
          %187 = sst [smem:[%s186]] 64
          %s188 = scalar_lea.smem [#allocation9], 4
          %189 = sst [smem:[%s188]] 64
          %s190 = scalar_lea.smem [#allocation9], 5
          %191 = sst [smem:[%s190]] 4
          %193 = dma.general %s161, 1024, %s175, %s149, 131072, [#allocation9], %s173, 0
        $region20: #{tpu_custom_call.1} parent=15 // pred_fallthru
          _
        // Predicated region
        $region21: #{tpu_custom_call.1} parent=15 // pred_check
          %p194 = pneg %p90
        $region22: #{tpu_custom_call.1} parent=15 // pred_check_branch
          %196 = sbr.rel (%p194) target = $region24
        $region23: #{tpu_custom_call.1} parent=15 // pred_region
          %s197 = sand.u32 %s80, 1
          %s198 = scalar_lea.sflag [#allocation6], %s197
          %s199 = sand.u32 %s80, 1
          %s200 = smul.addr %s199, 32
          %s201 = scalar_lea.vmem [#allocation5], %s200
          %s202 = sadd.s32 %s24, %s26
          %s203 = smul.u32 4, %s202
          %s205 = ssub.s32 512, 512
          %206 = vsyncadd %s198, %s205
          %s207 = smul.addr %s25, 8
          %s208 = sadd.s32 %s203, %s207
          %s209 = smul.addr %s208, 128
          %s210 = scalar_lea.hbm %s1, %s209
          %s211 = sshll.u32 %s201, 4
          %s212 = int_to_ptr.vmem [resolvable:$true] %s211
          %217 = dma.hbm_to_vmem [thread:$0]  %s210, 512, %s212, %s198, 128, 128, 8
        $region24: #{tpu_custom_call.1} parent=15 // pred_fallthru
          _
      $region16: #{tpu_custom_call.1} parent=5 // pred_fallthru
        _
      %p218 = scmp.le.s32.totalorder 1, %s17
      %p219 = scmp.lt.s32.totalorder %s17, 5
      %p220 = pnand %p218, %p219
      %p221 = pneg %p220
      // Predicated region
      $region25: #{tpu_custom_call.1} parent=5 // pred_check
        _
      $region26: #{tpu_custom_call.1} parent=5 // pred_check_branch
        %223 = sbr.rel (%p220) target = $region28
      $region27: #{tpu_custom_call.1} parent=5 // pred_region
        %s224 = ssub.s32 %s17, 1
        %s225 = sand.u32 %s53, 1
        %s226 = scalar_lea.sflag [#allocation3], %s225
        %s227 = sand.u32 %s53, 1
        %s228 = smul.addr %s227, 64
        %s229 = scalar_lea.vmem [#allocation2], %s228
        // Predicated region
        $region29: #{tpu_custom_call.1} parent=27 // pred_check
          %p230 = pneg %p66
        $region30: #{tpu_custom_call.1} parent=27 // pred_check_branch
          %232 = sbr.rel (%p230) target = $region32
        $region31: #{tpu_custom_call.1} parent=27 // pred_region
          %233 = dma.done %s226, 1024
        $region32: #{tpu_custom_call.1} parent=27 // pred_fallthru
          _
        %s234 = sand.u32 %s83, 1
        %s235 = scalar_lea.sflag [#allocation6], %s234
        %s236 = sand.u32 %s83, 1
        %s237 = smul.addr %s236, 32
        %s238 = scalar_lea.vmem [#allocation5], %s237
        // Predicated region
        $region33: #{tpu_custom_call.1} parent=27 // pred_check
          %p239 = pneg %p96
        $region34: #{tpu_custom_call.1} parent=27 // pred_check_branch
          %241 = sbr.rel (%p239) target = $region36
        $region35: #{tpu_custom_call.1} parent=27 // pred_region
          %242 = dma.done %s235, 512
        $region36: #{tpu_custom_call.1} parent=27 // pred_fallthru
          _
        %s243 = sand.u32 %s53, 1
        %s244 = scalar_lea.sflag [#allocation3], %s243
        %s245 = sand.u32 %s53, 1
        %s246 = smul.addr %s245, 64
        %s247 = scalar_lea.vmem [#allocation2], %s246
        %p248 = pneg %p66
        %p249 = pneg %p63
        %s250 = sand.u32 %s83, 1
        %s251 = scalar_lea.sflag [#allocation6], %s250
        %s252 = sand.u32 %s83, 1
        %s253 = smul.addr %s252, 32
        %s254 = scalar_lea.vmem [#allocation5], %s253
        %p255 = pneg %p96
        %p256 = pneg %p93
        %p257 = pneg %p126
        %p258 = pneg %p123
        %s259 = sand.u32 %s113, 1
        %s260 = scalar_lea.sflag [#allocation4], %s259
        %s261 = sand.u32 %s113, 1
        %s262 = smul.addr %s261, 96
        %s263 = scalar_lea.vmem [#allocation7], %s262
        %s264 = sadd.s32 %s27, %s29
        %s265 = smul.u32 4, %s264
        %s266 = sadd.s32 %s27, %s29
        %s267 = smul.u32 4, %s266
        %s268 = smul.u32 %s27, 2
        %s269 = sadd.s32 %s268, %s28
        %p270 = scmp.eq.s32.totalorder %s29, 0
        // Predicated region
        $region37: #{tpu_custom_call.1} parent=27 // pred_check
          %p271 = pneg %p270
        $region38: #{tpu_custom_call.1} parent=27 // pred_check_branch
          %273 = sbr.rel (%p271) target = $region40
        $region39: #{tpu_custom_call.1} parent=27 // pred_region
          %274 = vst [vmem:[%s263] sm:$0xff] 0.0
          %275 = vst [vmem:[%s263 + $0x8] sm:$0xff] 0.0
          %276 = vst [vmem:[%s263 + $0x10] sm:$0xff] 0.0
          %277 = vst [vmem:[%s263 + $0x18] sm:$0xff] 0.0
          %278 = vst [vmem:[%s263 + $0x20] sm:$0xff] 0.0
          %279 = vst [vmem:[%s263 + $0x28] sm:$0xff] 0.0
          %280 = vst [vmem:[%s263 + $0x30] sm:$0xff] 0.0
          %281 = vst [vmem:[%s263 + $0x38] sm:$0xff] 0.0
          %282 = vst [vmem:[%s263 + $0x40] sm:$0xff] 0.0
          %283 = vst [vmem:[%s263 + $0x48] sm:$0xff] 0.0
          %284 = vst [vmem:[%s263 + $0x50] sm:$0xff] 0.0
          %285 = vst [vmem:[%s263 + $0x58] sm:$0xff] 0.0
        $region40: #{tpu_custom_call.1} parent=27 // pred_fallthru
          _
        %v286 = vld [vmem:[%s229] sm:$0xf]
        %v287 = vld [vmem:[%s229 + $0x4] sm:$0xf]
        %v288 = vld [vmem:[%s229 + $0x10] sm:$0xf]
        %v289 = vld [vmem:[%s229 + $0x14] sm:$0xf]
        %v290 = vld [vmem:[%s229 + $0x20] sm:$0xf]
        %v291 = vld [vmem:[%s229 + $0x24] sm:$0xf]
        %v292 = vld [vmem:[%s229 + $0x30] sm:$0xf]
        %v293 = vld [vmem:[%s229 + $0x34] sm:$0xf]
        %v294 = vunpack.c.l.bf16 %v286
        %v295 = vunpack.c.l.bf16 %v287
        %v296 = vunpack.c.l.bf16 %v288
        %v297 = vunpack.c.l.bf16 %v289
        %v298 = vunpack.c.l.bf16 %v290
        %v299 = vunpack.c.l.bf16 %v291
        %v300 = vunpack.c.l.bf16 %v292
        %v301 = vunpack.c.l.bf16 %v293
        %v302 = vld [vmem:[%s238] sm:$0xff]
        %v303 = vld [vmem:[%s238 + $0x8] sm:$0xff]
        %v304 = vmax.f32 %v294, %v298
        %v305 = vmax.f32 %v296, %v300
        %v306 = vmax.f32 %v304, %v305
        %v307 = vmax.f32 %v295, %v299
        %v308 = vmax.f32 %v297, %v301
        %v309 = vmax.f32 %v307, %v308
        %v310 = vsub.f32 %v294, %v306
        %v311 = vsub.f32 %v295, %v309
        %v312 = vsub.f32 %v296, %v306
        %v313 = vsub.f32 %v297, %v309
        %v314 = vsub.f32 %v298, %v306
        %v315 = vsub.f32 %v299, %v309
        %v316 = vsub.f32 %v300, %v306
        %v317 = vsub.f32 %v301, %v309
        %v318 = vmul.f32 %v310, 1.442695
        %v319 = vpow.pop %v318
        %v320 = vmul.f32 %v311, 1.442695
        %v321 = vpow.pop %v320
        %v322 = vmul.f32 %v312, 1.442695
        %v323 = vpow.pop %v322
        %v324 = vmul.f32 %v313, 1.442695
        %v325 = vpow.pop %v324
        %v326 = vmul.f32 %v314, 1.442695
        %v327 = vpow.pop %v326
        %v328 = vmul.f32 %v315, 1.442695
        %v329 = vpow.pop %v328
        %v330 = vmul.f32 %v316, 1.442695
        %v331 = vpow.pop %v330
        %v332 = vmul.f32 %v317, 1.442695
        %v333 = vpow.pop %v332
        %v334 = vadd.f32 %v319, %v323
        %v335 = vadd.f32 %v334, %v327
        %v336 = vadd.f32 %v335, %v331
        %v337 = vadd.f32 %v321, %v325
        %v338 = vadd.f32 %v337, %v329
        %v339 = vadd.f32 %v338, %v333
        %v340 = vrcp.pop %v336
        %v341 = vrcp.pop %v339
        %v342 = vmul.f32 %v319, %v340
        %v343 = vmul.f32 %v321, %v341
        %v344 = vmul.f32 %v323, %v340
        %v345 = vmul.f32 %v325, %v341
        %v346 = vmul.f32 %v327, %v340
        %v347 = vmul.f32 %v329, %v341
        %v348 = vmul.f32 %v331, %v340
        %v349 = vmul.f32 %v333, %v341
        %vm350 = vcmp.eq.s32.totalorder %v302, 0
        %vm351 = vcmp.eq.s32.totalorder %v303, 0
        %vm352 = vcmp.eq.s32.totalorder %v302, 1
        %vm353 = vcmp.eq.s32.totalorder %v303, 1
        %vm354 = vcmp.eq.s32.totalorder %v302, 2
        %vm355 = vcmp.eq.s32.totalorder %v303, 2
        %vm356 = vcmp.eq.s32.totalorder %v302, 3
        %vm357 = vcmp.eq.s32.totalorder %v303, 3
        %v358 = vsel %vm350, %v342, 0.0
        %v359 = vsel %vm351, %v343, 0.0
        %v360 = vsel %vm352, %v344, 0.0
        %v361 = vsel %vm353, %v345, 0.0
        %v362 = vsel %vm354, %v346, 0.0
        %v363 = vsel %vm355, %v347, 0.0
        %v364 = vsel %vm356, %v348, 0.0
        %v365 = vsel %vm357, %v349, 0.0
        %v366 = vadd.f32 %v358, %v359
        %v367 = vadd.f32 %v360, %v361
        %v368 = vadd.f32 %v362, %v363
        %v369 = vadd.f32 %v364, %v365
        %v370 = vadd.f32 %v366, 0.0
        %v371 = vadd.f32 %v367, 0.0
        %v372 = vadd.f32 %v368, 0.0
        %v373 = vadd.f32 %v369, 0.0
        %v374 = vmul.f32 %v342, %v342
        %v375 = vmul.f32 %v343, %v343
        %v376 = vmul.f32 %v344, %v344
        %v377 = vmul.f32 %v345, %v345
        %v378 = vmul.f32 %v346, %v346
        %v379 = vmul.f32 %v347, %v347
        %v380 = vmul.f32 %v348, %v348
        %v381 = vmul.f32 %v349, %v349
        %v382 = vadd.f32 %v374, %v375
        %v383 = vadd.f32 %v376, %v377
        %v384 = vadd.f32 %v378, %v379
        %v385 = vadd.f32 %v380, %v381
        %v386 = vadd.f32 %v382, 0.0
        %v387 = vadd.f32 %v383, 0.0
        %v388 = vadd.f32 %v384, 0.0
        %v389 = vadd.f32 %v385, 0.0
        %v390 = vsel %vm350, 1.0, 0.0
        %v391 = vsel %vm351, 1.0, 0.0
        %v392 = vsel %vm352, 1.0, 0.0
        %v393 = vsel %vm353, 1.0, 0.0
        %v394 = vsel %vm354, 1.0, 0.0
        %v395 = vsel %vm355, 1.0, 0.0
        %v396 = vsel %vm356, 1.0, 0.0
        %v397 = vsel %vm357, 1.0, 0.0
        %v398 = vadd.f32 %v390, %v391
        %v399 = vadd.f32 %v392, %v393
        %v400 = vadd.f32 %v394, %v395
        %v401 = vadd.f32 %v396, %v397
        %v402 = vadd.f32 %v398, 0.0
        %v403 = vadd.f32 %v399, 0.0
        %v404 = vadd.f32 %v400, 0.0
        %v405 = vadd.f32 %v401, 0.0
        %s406 = scalar_lea.vmem %s229, 8 [#allocation2]
        %v407 = vld [vmem:[%s406] sm:$0xf]
        %v408 = vld [vmem:[%s406 + $0x4] sm:$0xf]
        %v409 = vld [vmem:[%s406 + $0x10] sm:$0xf]
        %v410 = vld [vmem:[%s406 + $0x14] sm:$0xf]
        %v411 = vld [vmem:[%s406 + $0x20] sm:$0xf]
        %v412 = vld [vmem:[%s406 + $0x24] sm:$0xf]
        %v413 = vld [vmem:[%s406 + $0x30] sm:$0xf]
        %v414 = vld [vmem:[%s406 + $0x34] sm:$0xf]
        %v415 = vunpack.c.l.bf16 %v407
        %v416 = vunpack.c.l.bf16 %v408
        %v417 = vunpack.c.l.bf16 %v409
        %v418 = vunpack.c.l.bf16 %v410
        %v419 = vunpack.c.l.bf16 %v411
        %v420 = vunpack.c.l.bf16 %v412
        %v421 = vunpack.c.l.bf16 %v413
        %v422 = vunpack.c.l.bf16 %v414
        %s423 = scalar_lea.vmem %s238, 16 [#allocation5]
        %v424 = vld [vmem:[%s423] sm:$0xff]
        %v425 = vld [vmem:[%s423 + $0x8] sm:$0xff]
        %v426 = vmax.f32 %v415, %v419
        %v427 = vmax.f32 %v417, %v421
        %v428 = vmax.f32 %v426, %v427
        %v429 = vmax.f32 %v416, %v420
        %v430 = vmax.f32 %v418, %v422
        %v431 = vmax.f32 %v429, %v430
        %v432 = vsub.f32 %v415, %v428
        %v433 = vsub.f32 %v416, %v431
        %v434 = vsub.f32 %v417, %v428
        %v435 = vsub.f32 %v418, %v431
        %v436 = vsub.f32 %v419, %v428
        %v437 = vsub.f32 %v420, %v431
        %v438 = vsub.f32 %v421, %v428
        %v439 = vsub.f32 %v422, %v431
        %v440 = vmul.f32 %v432, 1.442695
        %v441 = vpow.pop %v440
        %v442 = vmul.f32 %v433, 1.442695
        %v443 = vpow.pop %v442
        %v444 = vmul.f32 %v434, 1.442695
        %v445 = vpow.pop %v444
        %v446 = vmul.f32 %v435, 1.442695
        %v447 = vpow.pop %v446
        %v448 = vmul.f32 %v436, 1.442695
        %v449 = vpow.pop %v448
        %v450 = vmul.f32 %v437, 1.442695
        %v451 = vpow.pop %v450
        %v452 = vmul.f32 %v438, 1.442695
        %v453 = vpow.pop %v452
        %v454 = vmul.f32 %v439, 1.442695
        %v455 = vpow.pop %v454
        %v456 = vadd.f32 %v441, %v445
        %v457 = vadd.f32 %v456, %v449
        %v458 = vadd.f32 %v457, %v453
        %v459 = vadd.f32 %v443, %v447
        %v460 = vadd.f32 %v459, %v451
        %v461 = vadd.f32 %v460, %v455
        %v462 = vrcp.pop %v458
        %v463 = vrcp.pop %v461
        %v464 = vmul.f32 %v441, %v462
        %v465 = vmul.f32 %v443, %v463
        %v466 = vmul.f32 %v445, %v462
        %v467 = vmul.f32 %v447, %v463
        %v468 = vmul.f32 %v449, %v462
        %v469 = vmul.f32 %v451, %v463
        %v470 = vmul.f32 %v453, %v462
        %v471 = vmul.f32 %v455, %v463
        %vm472 = vcmp.eq.s32.totalorder %v424, 0
        %vm473 = vcmp.eq.s32.totalorder %v425, 0
        %vm474 = vcmp.eq.s32.totalorder %v424, 1
        %vm475 = vcmp.eq.s32.totalorder %v425, 1
        %vm476 = vcmp.eq.s32.totalorder %v424, 2
        %vm477 = vcmp.eq.s32.totalorder %v425, 2
        %vm478 = vcmp.eq.s32.totalorder %v424, 3
        %vm479 = vcmp.eq.s32.totalorder %v425, 3
        %v480 = vsel %vm472, %v464, 0.0
        %v481 = vsel %vm473, %v465, 0.0
        %v482 = vsel %vm474, %v466, 0.0
        %v483 = vsel %vm475, %v467, 0.0
        %v484 = vsel %vm476, %v468, 0.0
        %v485 = vsel %vm477, %v469, 0.0
        %v486 = vsel %vm478, %v470, 0.0
        %v487 = vsel %vm479, %v471, 0.0
        %v488 = vadd.f32 %v480, %v481
        %v489 = vadd.f32 %v482, %v483
        %v490 = vadd.f32 %v484, %v485
        %v491 = vadd.f32 %v486, %v487
        %v492 = vadd.f32 %v370, %v488
        %v493 = vadd.f32 %v371, %v489
        %v494 = vadd.f32 %v372, %v490
        %v495 = vadd.f32 %v373, %v491
        %v496 = vmul.f32 %v464, %v464
        %v497 = vmul.f32 %v465, %v465
        %v498 = vmul.f32 %v466, %v466
        %v499 = vmul.f32 %v467, %v467
        %v500 = vmul.f32 %v468, %v468
        %v501 = vmul.f32 %v469, %v469
        %v502 = vmul.f32 %v470, %v470
        %v503 = vmul.f32 %v471, %v471
        %v504 = vadd.f32 %v496, %v497
        %v505 = vadd.f32 %v498, %v499
        %v506 = vadd.f32 %v500, %v501
        %v507 = vadd.f32 %v502, %v503
        %v508 = vadd.f32 %v386, %v504
        %v509 = vadd.f32 %v387, %v505
        %v510 = vadd.f32 %v388, %v506
        %v511 = vadd.f32 %v389, %v507
        %v512 = vsel %vm472, 1.0, 0.0
        %v513 = vsel %vm473, 1.0, 0.0
        %v514 = vsel %vm474, 1.0, 0.0
        %v515 = vsel %vm475, 1.0, 0.0
        %v516 = vsel %vm476, 1.0, 0.0
        %v517 = vsel %vm477, 1.0, 0.0
        %v518 = vsel %vm478, 1.0, 0.0
        %v519 = vsel %vm479, 1.0, 0.0
        %v520 = vadd.f32 %v512, %v513
        %v521 = vadd.f32 %v514, %v515
        %v522 = vadd.f32 %v516, %v517
        %v523 = vadd.f32 %v518, %v519
        %v524 = vadd.f32 %v402, %v520
        %v525 = vadd.f32 %v403, %v521
        %v526 = vadd.f32 %v404, %v522
        %v527 = vadd.f32 %v405, %v523
        %v528 = vld [vmem:[%s263] sm:$0xff]
        %v529 = vld [vmem:[%s263 + $0x8] sm:$0xff]
        %v530 = vld [vmem:[%s263 + $0x10] sm:$0xff]
        %v531 = vld [vmem:[%s263 + $0x18] sm:$0xff]
        %v532 = vadd.f32 %v528, %v492
        %v533 = vadd.f32 %v529, %v493
        %v534 = vadd.f32 %v530, %v494
        %v535 = vadd.f32 %v531, %v495
        %536 = vst [vmem:[%s263] sm:$0xff] %v532
        %537 = vst [vmem:[%s263 + $0x8] sm:$0xff] %v533
        %538 = vst [vmem:[%s263 + $0x10] sm:$0xff] %v534
        %539 = vst [vmem:[%s263 + $0x18] sm:$0xff] %v535
        %s540 = scalar_lea.vmem %s263, 32 [#allocation7]
        %v541 = vld [vmem:[%s540] sm:$0xff]
        %v542 = vld [vmem:[%s540 + $0x8] sm:$0xff]
        %v543 = vld [vmem:[%s540 + $0x10] sm:$0xff]
        %v544 = vld [vmem:[%s540 + $0x18] sm:$0xff]
        %v545 = vadd.f32 %v541, %v508
        %v546 = vadd.f32 %v542, %v509
        %v547 = vadd.f32 %v543, %v510
        %v548 = vadd.f32 %v544, %v511
        %549 = vst [vmem:[%s540] sm:$0xff] %v545
        %550 = vst [vmem:[%s540 + $0x8] sm:$0xff] %v546
        %551 = vst [vmem:[%s540 + $0x10] sm:$0xff] %v547
        %552 = vst [vmem:[%s540 + $0x18] sm:$0xff] %v548
        %s553 = scalar_lea.vmem %s263, 64 [#allocation7]
        %v554 = vld [vmem:[%s553] sm:$0xff]
        %v555 = vld [vmem:[%s553 + $0x8] sm:$0xff]
        %v556 = vld [vmem:[%s553 + $0x10] sm:$0xff]
        %v557 = vld [vmem:[%s553 + $0x18] sm:$0xff]
        %v558 = vadd.f32 %v554, %v524
        %v559 = vadd.f32 %v555, %v525
        %v560 = vadd.f32 %v556, %v526
        %v561 = vadd.f32 %v557, %v527
        %562 = vst [vmem:[%s553] sm:$0xff] %v558
        %563 = vst [vmem:[%s553 + $0x8] sm:$0xff] %v559
        %564 = vst [vmem:[%s553 + $0x10] sm:$0xff] %v560
        %565 = vst [vmem:[%s553 + $0x18] sm:$0xff] %v561
        %s566 = sand.u32 %s113, 1
        %s567 = scalar_lea.sflag [#allocation4], %s566
        %s568 = sand.u32 %s113, 1
        %s569 = smul.addr %s568, 96
        %s570 = scalar_lea.vmem [#allocation7], %s569
        // Predicated region
        $region41: #{tpu_custom_call.1} parent=27 // pred_check
          %p571 = pneg %p123
        $region42: #{tpu_custom_call.1} parent=27 // pred_check_branch
          %573 = sbr.rel (%p571) target = $region44
        $region43: #{tpu_custom_call.1} parent=27 // pred_region
          %s574 = smul.u32 %s27, 2
          %s575 = sadd.s32 %s574, %s28
          %s577 = ssub.s32 1536, 1536
          %578 = vsyncadd %s567, %s577
          %s579 = smul.addr %s575, 12
          %s580 = smul.addr %s579, 128
          %s581 = scalar_lea.hbm %s2, %s580
          %s582 = sshll.u32 %s570, 4
          %s583 = int_to_ptr.vmem [resolvable:$true] %s582
          %588 = dma.vmem_to_hbm [thread:$0]  %s583, 1536, %s581, %s567, 128, 128, 8
        $region44: #{tpu_custom_call.1} parent=27 // pred_fallthru
          _
      $region28: #{tpu_custom_call.1} parent=5 // pred_fallthru
        _
      %p589 = scmp.le.s32.totalorder 2, %s17
      // Predicated region
      $region45: #{tpu_custom_call.1} parent=5 // pred_check
        %p590 = pneg %p589
      $region46: #{tpu_custom_call.1} parent=5 // pred_check_branch
        %592 = sbr.rel (%p590) target = $region48
      $region47: #{tpu_custom_call.1} parent=5 // pred_region
        %s593 = ssub.s32 %s17, 2
        // Predicated region
        $region49: #{tpu_custom_call.1} parent=47 // pred_check
          %p594 = pneg %p129
        $region50: #{tpu_custom_call.1} parent=47 // pred_check_branch
          %596 = sbr.rel (%p594) target = $region52
        $region51: #{tpu_custom_call.1} parent=47 // pred_region
          %s597 = sand.u32 %s114, 1
          %s598 = scalar_lea.sflag [#allocation4], %s597
          %s599 = sand.u32 %s114, 1
          %s600 = smul.addr %s599, 96
          %s601 = scalar_lea.vmem [#allocation7], %s600
          %602 = dma.done %s598, 1536
        $region52: #{tpu_custom_call.1} parent=47 // pred_fallthru
          _
      $region48: #{tpu_custom_call.1} parent=5 // pred_fallthru
        _
    $region6: #{tpu_custom_call.1} parent=1 // loop_footer
      %s21 = sadd.s32 1, %s17
    $region7: #{tpu_custom_call.1} parent=1 // loop_footer_branch
      %16 = sbr.rel target = $region3
    $region8: #{tpu_custom_call.1} parent=1 // loop_exit
      _
    %603 = vsyncpa [#allocation3], 1
    %s604 = scalar_lea.sflag [#allocation3], 1
    %605 = vsyncpa %s604, 1
    %606 = vsyncpa [#allocation6], 1
    %s607 = scalar_lea.sflag [#allocation6], 1
    %608 = vsyncpa %s607, 1
    %609 = vsyncpa [#allocation4], 1
    %s610 = scalar_lea.sflag [#allocation4], 1
    %611 = vsyncpa %s610, 1

</llo_original>
